<compile_context>
chip_gen: v5e
topology: v5e:2x2
jax: 0.10.0
libtpu: 0.0.40
codegen_flags: <defaults>
</compile_context>

<pallas_src>
import jax
import jax.numpy as jnp
from jax.experimental import pallas as pl
from jax.experimental.pallas import tpu as pltpu

_LANES = 128
_SUBLANES = 8


def _round_up(v, m):
    return ((v + m - 1) // m) * m


def _cdiv(a, b):
    return (a + b - 1) // b


def _pad_last_dim(a, multiple=_LANES):
    pad = (-a.shape[-1]) % multiple
    if pad == 0:
        return a
    widths = [(0, 0)] * (a.ndim - 1) + [(0, pad)]
    return jnp.pad(a, widths)


def _vmem_capacity_bytes():
    """Physical VMEM of the local TPU generation; conservative (v7x, 64 MiB)
    fallback if the query is unavailable."""
    default = 64 * 1024 * 1024
    try:
        info = pltpu.get_tpu_info()
        cap = int(getattr(info, "vmem_capacity_bytes", default))
        return cap if cap > 0 else default
    except Exception:  # pragma: no cover - query not available everywhere
        return default


def _choose_tile(n, target, quantum, max_waste=0.07):
    """Largest power-of-two multiple of `quantum` (<= target) such that zero-
    padding `n` up to a tile multiple costs at most `max_waste` extra work.
    Always returns at least `quantum`, so blocks stay (8,128)-aligned."""
    best = quantum
    t = 2 * quantum
    while t <= target:
        if _round_up(n, t) <= max(n, quantum) * (1.0 + max_waste):
            best = t
        t *= 2
    return best


# --------------------------- fused (small) path ------------------------------

def _fused_kernel_xw_first(x_ref, w_ref, adj_ref, b_ref, o_ref):
    xw = jnp.dot(x_ref[...], w_ref[...], preferred_element_type=jnp.float32)
    axw = jnp.dot(adj_ref[...], xw.astype(adj_ref.dtype),
                  preferred_element_type=jnp.float32)
    o_ref[...] = (axw + b_ref[...]).astype(o_ref.dtype)


def _fused_kernel_ax_first(x_ref, w_ref, adj_ref, b_ref, o_ref):
    ax = jnp.dot(adj_ref[...], x_ref[...], preferred_element_type=jnp.float32)
    axw = jnp.dot(ax.astype(w_ref.dtype), w_ref[...],
                  preferred_element_type=jnp.float32)
    o_ref[...] = (axw + b_ref[...]).astype(o_ref.dtype)


def _gcn_fused(x, w_pad, adj, bias_pad, xw_first, vmem_limit):
    n, f_in = x.shape
    f_pad = w_pad.shape[1]
    kernel = _fused_kernel_xw_first if xw_first else _fused_kernel_ax_first
    vmem = pl.BlockSpec(memory_space=pltpu.MemorySpace.VMEM)

    if xw_first:
        flops = 2 * n * f_in * f_pad + 2 * n * n * f_pad
    else:
        flops = 2 * n * n * f_in + 2 * n * f_in * f_pad
    isz = x.dtype.itemsize
    bytes_accessed = int(isz * (x.size + adj.size + w_pad.size)
                         + 4 * (bias_pad.size + n * f_pad))

    return pl.pallas_call(
        kernel,
        out_shape=jax.ShapeDtypeStruct((n, f_pad), jnp.float32),
        in_specs=[vmem, vmem, vmem, vmem],
        out_specs=vmem,
        compiler_params=pltpu.CompilerParams(vmem_limit_bytes=vmem_limit),
        cost_estimate=pl.CostEstimate(flops=int(flops), transcendentals=0,
                                      bytes_accessed=bytes_accessed),
    )(x, w_pad, adj, bias_pad)


# ---------------------------- tiled (large) path ------------------------------

def _gcn_tiled_kernel(adj_ref, x_ref, w_ref, b_ref, o_ref):
    # Recompute this contraction-tile's xw in-kernel (w is VMEM-resident); the
    # extra MXU work is ~f_in/tm of the adj matmul while saving the xw HBM
    # roundtrip of a separate stage.
    xw = jnp.dot(x_ref[...], w_ref[...], preferred_element_type=jnp.float32)
    part = jnp.dot(adj_ref[...], xw.astype(adj_ref.dtype),
                   preferred_element_type=jnp.float32)

    # Accumulate directly into the (f32, VMEM-resident) output block: its block
    # index is constant across the k axis, so no separate accumulator scratch.
    @pl.when(pl.program_id(1) == 0)
    def _():
        o_ref[...] = (part + b_ref[...]).astype(o_ref.dtype)

    @pl.when(pl.program_id(1) != 0)
    def _():
        o_ref[...] = o_ref[...] + part.astype(o_ref.dtype)


def _gcn_tiled(x, w_pad, adj, bias_pad, tm, tk, vmem_limit):
    n, f_in = x.shape
    f_pad = w_pad.shape[1]

    # Zero-pad N so both grid axes are exact tile multiples (padded adj
    # rows/cols and x rows are zero -> exact result; padded output rows are
    # sliced off by the caller).
    # TODO(synk): for huge N the XLA pad copies adj once in HBM; a masked
    # ragged-edge kernel would avoid that extra pass.
    n_rows = _round_up(n, tm)
    n_cols = _round_up(n, tk)
    adj_p = adj if (n_rows == n and n_cols == n) else \
        jnp.pad(adj, ((0, n_rows - n), (0, n_cols - n)))
    x_p = x if n_cols == n else jnp.pad(x, ((0, n_cols - n), (0, 0)))

    grid_m = n_rows // tm
    grid_k = n_cols // tk

    isz = x.dtype.itemsize
    flops = 2 * n_rows * n_cols * f_pad + 2 * grid_m * n_cols * f_in * f_pad
    bytes_accessed = int(isz * (adj_p.size + grid_m * x_p.size + w_pad.size)
                         + 4 * (bias_pad.size + n_rows * f_pad))

    return pl.pallas_call(
        _gcn_tiled_kernel,
        out_shape=jax.ShapeDtypeStruct((n_rows, f_pad), jnp.float32),
        grid=(grid_m, grid_k),
        in_specs=[
            pl.BlockSpec((tm, tk), lambda i, k: (i, k)),        # adj tile
            pl.BlockSpec((tk, f_in), lambda i, k: (k, 0)),      # x contraction tile
            pl.BlockSpec((f_in, f_pad), lambda i, k: (0, 0)),   # w (resident)
            pl.BlockSpec((1, f_pad), lambda i, k: (0, 0)),      # bias (resident)
        ],
        out_specs=pl.BlockSpec((tm, f_pad), lambda i, k: (i, 0)),
        compiler_params=pltpu.CompilerParams(
            dimension_semantics=("parallel", "arbitrary"),
            vmem_limit_bytes=vmem_limit,
        ),
        cost_estimate=pl.CostEstimate(flops=int(flops), transcendentals=0,
                                      bytes_accessed=bytes_accessed),
    )(adj_p, x_p, w_pad, bias_pad)


# --------------------------------- wrapper ------------------------------------

def graph_convolution_layer(x, w, adj, bias, *, force_tiled=False,
                            tile_m=None, tile_k=None,
                            fused_vmem_budget=None, use_bf16=False):
    """out = adj @ (x @ w) + bias  (GraphConvolutionLayer.forward).

    x: [N, F_in], w: [F_in, F_out], adj: [N, N], bias: [F_out] -> [N, F_out]
    use_bf16=True feeds the MXU bf16 operands with f32 accumulation
    (halves adj HBM traffic; ~1e-3-class error, off by default).
    """
    n, f_in = x.shape
    f_out = w.shape[1]

    compute_dtype = jnp.bfloat16 if use_bf16 else jnp.float32
    x = x.astype(compute_dtype)
    adj = adj.astype(compute_dtype)
    # Lane-dense output layout: pad output-feature axis to a multiple of 128.
    w_pad = _pad_last_dim(w.astype(compute_dtype))
    bias_pad = _pad_last_dim(bias.astype(jnp.float32).reshape(1, f_out))
    f_pad = w_pad.shape[1]

    # Per-generation VMEM budgets (128 MiB on v5e/v6e, 64 MiB on v7x).
    phys_vmem = _vmem_capacity_bytes()
    big_vmem = phys_vmem >= 96 * 1024 * 1024
    vmem_limit = int(phys_vmem * 0.70)               # ~90 MiB v5e/v6e, ~45 MiB v7x
    if fused_vmem_budget is None:
        fused_vmem_budget = int(phys_vmem * 0.45)    # ~58 MiB / ~29 MiB

    # Matmul order (fused path) by FLOPs; also fixes the intermediate size we
    # must count in the fused VMEM footprint.
    xw_first = f_pad <= f_in
    inter_cols = f_pad if xw_first else f_in
    isz = jnp.dtype(compute_dtype).itemsize
    fused_bytes = int(isz * (x.size + adj.size + w_pad.size)
                      + 4 * (bias_pad.size + n * f_pad + n * inter_cols))

    if force_tiled or fused_bytes > fused_vmem_budget:
        tm_target = tile_m if tile_m is not None else 1024
        tk_target = tile_k if tile_k is not None else (4096 if big_vmem else 2048)
        tm = _choose_tile(n, tm_target, _SUBLANES)
        tk = _choose_tile(n, tk_target, _LANES)
        # Keep >= 2 row tiles so the "parallel" axis can shard across both
        # TensorCores on v7x.
        while _cdiv(n, tm) < 2 and tm >= 2 * _SUBLANES:
            tm //= 2
        out_pad = _gcn_tiled(x, w_pad, adj, bias_pad, tm, tk, vmem_limit)
    else:
        out_pad = _gcn_fused(x, w_pad, adj, bias_pad, xw_first, vmem_limit)

    return out_pad[:n, :f_out]


if __name__ == "__main__":
    key = jax.random.PRNGKey(0)
    k_x, k_adj, k_w, k_b = jax.random.split(key, 4)

    # Shapes consistent with the module: N nodes, in_features -> out_features.
    N, in_features, out_features = 64, 32, 16
    x = jax.random.normal(k_x, (N, in_features), dtype=jnp.float32)
    adj = jax.random.uniform(k_adj, (N, N), dtype=jnp.float32)          # adj_matrix
    w = jax.random.uniform(k_w, (in_features, out_features), dtype=jnp.float32)
    bias = jax.random.uniform(k_b, (out_features,), dtype=jnp.float32)

    def ref_fn(x_, adj_):
        return jnp.dot(adj_, jnp.dot(x_, w, precision="highest"),
                       precision="highest") + bias[None, :]

    # 1) Fused (small-graph) path: all operands VMEM-resident, single kernel.
    out = jax.block_until_ready(graph_convolution_layer(x, w, adj, bias))
    assert out.shape == (N, out_features)
    assert jnp.allclose(out, ref_fn(x, adj), atol=1e-4, rtol=1e-4), \
        float(jnp.max(jnp.abs(out - ref_fn(x, adj))))

    # 2) Tiled path (exact tile multiples): in-kernel xw recompute + direct
    #    accumulation into the resident output block over the contraction axis.
    N2 = 512
    x2 = jax.random.normal(k_x, (N2, in_features), dtype=jnp.float32)
    adj2 = jax.random.uniform(k_adj, (N2, N2), dtype=jnp.float32)
    out2 = jax.block_until_ready(
        graph_convolution_layer(x2, w, adj2, bias,
                                force_tiled=True, tile_m=256, tile_k=256))
    assert out2.shape == (N2, out_features)
    assert jnp.allclose(out2, ref_fn(x2, adj2), atol=1e-3, rtol=1e-3), \
        float(jnp.max(jnp.abs(out2 - ref_fn(x2, adj2))))

    # 3) Tiled path with awkward N: exercises zero-padding of rows/cols to tile
    #    multiples and the slice back to (N, out_features).
    N3 = 200
    x3 = jax.random.normal(k_x, (N3, in_features), dtype=jnp.float32)
    adj3 = jax.random.uniform(k_adj, (N3, N3), dtype=jnp.float32)
    out3 = jax.block_until_ready(
        graph_convolution_layer(x3, w, adj3, bias, force_tiled=True))
    assert out3.shape == (N3, out_features)
    assert jnp.allclose(out3, ref_fn(x3, adj3), atol=1e-3, rtol=1e-3), \
        float(jnp.max(jnp.abs(out3 - ref_fn(x3, adj3))))

    print("KERNEL_OK")
</pallas_src>

<mosaic_0001>
module attributes {stable_mosaic.version = 11 : i64} {
  func.func @_fused_kernel_ax_first(%arg0: memref<64x32xf32, #tpu.memory_space<vmem>>, %arg1: memref<32x128xf32, #tpu.memory_space<vmem>>, %arg2: memref<64x64xf32, #tpu.memory_space<vmem>>, %arg3: memref<1x128xf32, #tpu.memory_space<vmem>>, %arg4: memref<64x128xf32, #tpu.memory_space<vmem>>) attributes {dimension_semantics = [], scalar_prefetch = 0 : i64, scratch_operands = 0 : i64, tpu.core_type = #tpu.core_type<tc>} {
    %c0 = arith.constant 0 : index
    %c0_0 = arith.constant 0 : index
    %0 = vector.load %arg2[%c0, %c0_0] : memref<64x64xf32, #tpu.memory_space<vmem>>, vector<64x64xf32>
    %c0_1 = arith.constant 0 : index
    %c0_2 = arith.constant 0 : index
    %1 = vector.load %arg0[%c0_1, %c0_2] : memref<64x32xf32, #tpu.memory_space<vmem>>, vector<64x32xf32>
    %cst = arith.constant dense<0.000000e+00> : vector<64x32xf32>
    %2 = tpu.matmul %0, %1, %cst {dimension_numbers = #tpu.dot_dimension_numbers<[1], [0], [0], [1], [0, 0, 1, 1], [], []>} : vector<64x64xf32>, vector<64x32xf32>, vector<64x32xf32> -> vector<64x32xf32>
    %c0_3 = arith.constant 0 : index
    %c0_4 = arith.constant 0 : index
    %3 = vector.load %arg1[%c0_3, %c0_4] : memref<32x128xf32, #tpu.memory_space<vmem>>, vector<32x128xf32>
    %cst_5 = arith.constant dense<0.000000e+00> : vector<64x128xf32>
    %4 = tpu.matmul %2, %3, %cst_5 {dimension_numbers = #tpu.dot_dimension_numbers<[1], [0], [0], [1], [0, 0, 1, 1], [], []>} : vector<64x32xf32>, vector<32x128xf32>, vector<64x128xf32> -> vector<64x128xf32>
    %c0_6 = arith.constant 0 : index
    %c0_7 = arith.constant 0 : index
    %5 = vector.load %arg3[%c0_6, %c0_7] : memref<1x128xf32, #tpu.memory_space<vmem>>, vector<1x128xf32>
    %6 = vector.broadcast %5 : vector<1x128xf32> to vector<64x128xf32>
    %7 = arith.addf %4, %6 : vector<64x128xf32>
    %c0_8 = arith.constant 0 : index
    %c0_9 = arith.constant 0 : index
    %8 = vector.load %arg4[%c0_8, %c0_9] : memref<64x128xf32, #tpu.memory_space<vmem>>, vector<64x128xf32>
    tpu.vector_store %arg4[%c0_8, %c0_9], %7 {strides = array<i32>} : memref<64x128xf32, #tpu.memory_space<vmem>>, vector<64x128xf32>,
    return
  }
}

</mosaic_0001>

<llo_original>
// kernel: tpu_custom_call.1
$region0: #{tpu_custom_call.1}
  #allocation0 [shape = 'u32[]', space=smem, size = 0x4, offset = 0x4, fixed_abs, tag = 'smem constant byte address 0x4 - core index']
  #allocation1 [shape = 'u32[72,128]{1,0:T(1,128)}', space=vmem, size = 0x9000, scoped, tag = 'internal scratch']
  %s0 = inlined_call_operand.vmem [shape: f32[64,32], index: 0, kind: input, shape index: {}]
  %s1 = inlined_call_operand.vmem [shape: f32[32,128], index: 1, kind: input, shape index: {}]
  %s2 = inlined_call_operand.vmem [shape: f32[64,64], index: 2, kind: input, shape index: {}]
  %s3 = inlined_call_operand.vmem [shape: f32[1,128], index: 3, kind: input, shape index: {}]
  %s4 = inlined_call_operand.hbm [shape: f32[64,128], index: 4, kind: output, shape index: {}]
  %s5 = sld [smem:[#allocation0]]
  $region26: #{tpu_custom_call.1} parent=0
    _
  %s7 = ssub.s32 1, %s5
  %s8 = scalar_select 0, %s7, %s5
  $region1: #{tpu_custom_call.1} parent=0
    #allocation2 [shape = 'u8[32768]{0}', space=vmem, size = 0x8000, scoped, tag = 'output window, operand 0, single buffered']
    #allocation3 [shape = 's32[1]{0}', space=sflag, size = 0x4, scoped, tag = 'scoped memory for tpu_custom_call.1']
    %9 = vsyncpa [#allocation3], 0
    // Predicated region
    $region2: #{tpu_custom_call.1} parent=1 // pred_check
      _
    $region3: #{tpu_custom_call.1} parent=1 // pred_check_branch
      %11 = sbr.rel (0) target = $region5
    $region4: #{tpu_custom_call.1} parent=1 // pred_region
      _
    $region5: #{tpu_custom_call.1} parent=1 // pred_fallthru
      _
    // Predicated region
    $region6: #{tpu_custom_call.1} parent=1 // pred_check
      _
    $region7: #{tpu_custom_call.1} parent=1 // pred_check_branch
      %13 = sbr.rel (0) target = $region9
    $region8: #{tpu_custom_call.1} parent=1 // pred_region
      _
    $region9: #{tpu_custom_call.1} parent=1 // pred_fallthru
      _
    // Predicated region
    $region10: #{tpu_custom_call.1} parent=1 // pred_check
      _
    $region11: #{tpu_custom_call.1} parent=1 // pred_check_branch
      %15 = sbr.rel (0) target = $region13
    $region12: #{tpu_custom_call.1} parent=1 // pred_region
      _
    $region13: #{tpu_custom_call.1} parent=1 // pred_fallthru
      _
    // Predicated region
    $region14: #{tpu_custom_call.1} parent=1 // pred_check
      _
    $region15: #{tpu_custom_call.1} parent=1 // pred_check_branch
      %17 = sbr.rel (0) target = $region17
    $region16: #{tpu_custom_call.1} parent=1 // pred_region
      _
    $region17: #{tpu_custom_call.1} parent=1 // pred_fallthru
      _
    %v18 = vld [vmem:[%s2] sm:$0xff]
    %v19 = vld [vmem:[%s2 + $0x8] sm:$0xff]
    %v20 = vld [vmem:[%s2 + $0x10] sm:$0xff]
    %v21 = vld [vmem:[%s2 + $0x18] sm:$0xff]
    %v22 = vld [vmem:[%s2 + $0x20] sm:$0xff]
    %v23 = vld [vmem:[%s2 + $0x28] sm:$0xff]
    %v24 = vld [vmem:[%s2 + $0x30] sm:$0xff]
    %v25 = vld [vmem:[%s2 + $0x38] sm:$0xff]
    %v26 = vld [vmem:[%s0] sm:$0xff]
    %v27 = vld [vmem:[%s0 + $0x8] sm:$0xff]
    %v28 = vld [vmem:[%s0 + $0x10] sm:$0xff]
    %v29 = vld [vmem:[%s0 + $0x18] sm:$0xff]
    %v30 = vld [vmem:[%s0 + $0x20] sm:$0xff]
    %v31 = vld [vmem:[%s0 + $0x28] sm:$0xff]
    %v32 = vld [vmem:[%s0 + $0x30] sm:$0xff]
    %v33 = vld [vmem:[%s0 + $0x38] sm:$0xff]
    %vm34 = vcmask 523264
    %v36 = vsel %vm34, %v18, 0
    %v39 = vsel %vm34, %v19, 0
    %v42 = vsel %vm34, %v20, 0
    %v45 = vsel %vm34, %v21, 0
    %v48 = vsel %vm34, %v22, 0
    %v51 = vsel %vm34, %v23, 0
    %v54 = vsel %vm34, %v24, 0
    %v57 = vsel %vm34, %v25, 0
    %59 = vmatpush.msra.mxu0 0.0
    %60 = vmatpush.msra.mxu0 0.0
    %61 = vmatpush.msra.mxu0 0.0
    %62 = vmatpush.msra.mxu0 0.0
    %63 = vmatpush.msra.mxu0 0.0
    %64 = vmatpush.msra.mxu0 0.0
    %65 = vmatpush.msra.mxu0 0.0
    %66 = vmatpush.msra.mxu0 0.0
    %67 = vmatpush.msra.mxu0 %v33
    %68 = vmatpush.msra.mxu0 %v32
    %69 = vmatpush.msra.mxu0 %v31
    %70 = vmatpush.msra.mxu0 %v30
    %71 = vmatpush.msra.mxu0 %v29
    %72 = vmatpush.msra.mxu0 %v28
    %73 = vmatpush.msra.mxu0 %v27
    %74 = vmatpush.msra.mxu0 %v26
    %75 = vmatmul.f32.gmra.mxu0 %v36
    %v76 = vpop.f32.mrf.mxu0
    %v77 = vadd.f32 0.0, %v76
    %78 = vmatmul.f32.gmra.mxu0 %v39
    %v79 = vpop.f32.mrf.mxu0
    %v80 = vadd.f32 0.0, %v79
    %81 = vmatmul.f32.gmra.mxu0 %v42
    %v82 = vpop.f32.mrf.mxu0
    %v83 = vadd.f32 0.0, %v82
    %84 = vmatmul.f32.gmra.mxu0 %v45
    %v85 = vpop.f32.mrf.mxu0
    %v86 = vadd.f32 0.0, %v85
    %87 = vmatmul.f32.gmra.mxu0 %v48
    %v88 = vpop.f32.mrf.mxu0
    %v89 = vadd.f32 0.0, %v88
    %90 = vmatmul.f32.gmra.mxu0 %v51
    %v91 = vpop.f32.mrf.mxu0
    %v92 = vadd.f32 0.0, %v91
    %93 = vmatmul.f32.gmra.mxu0 %v54
    %v94 = vpop.f32.mrf.mxu0
    %v95 = vadd.f32 0.0, %v94
    %96 = vmatmul.f32.gmra.mxu0 %v57
    %v97 = vpop.f32.mrf.mxu0
    %v98 = vadd.f32 0.0, %v97
    %99 = vdwg.mxu0
    %v100 = vld [vmem:[%s1] sm:$0xff]
    %v101 = vld [vmem:[%s1 + $0x8] sm:$0xff]
    %v102 = vld [vmem:[%s1 + $0x10] sm:$0xff]
    %v103 = vld [vmem:[%s1 + $0x18] sm:$0xff]
    %v104 = vld [vmem:[%s3] sm:$0x1]
    %v106 = vperm.slane %v104, 0
    %vm108 = vcmask 261120
    %v110 = vsel %vm108, %v77, 0
    %v113 = vsel %vm108, %v80, 0
    %v116 = vsel %vm108, %v83, 0
    %v119 = vsel %vm108, %v86, 0
    %v122 = vsel %vm108, %v89, 0
    %v125 = vsel %vm108, %v92, 0
    %v128 = vsel %vm108, %v95, 0
    %v131 = vsel %vm108, %v98, 0
    %133 = vmatpush.msra.mxu0 0.0
    %134 = vmatpush.msra.mxu0 0.0
    %135 = vmatpush.msra.mxu0 0.0
    %136 = vmatpush.msra.mxu0 0.0
    %137 = vmatpush.msra.mxu0 0.0
    %138 = vmatpush.msra.mxu0 0.0
    %139 = vmatpush.msra.mxu0 0.0
    %140 = vmatpush.msra.mxu0 0.0
    %141 = vmatpush.msra.mxu0 0.0
    %142 = vmatpush.msra.mxu0 0.0
    %143 = vmatpush.msra.mxu0 0.0
    %144 = vmatpush.msra.mxu0 0.0
    %145 = vmatpush.msra.mxu0 %v103
    %146 = vmatpush.msra.mxu0 %v102
    %147 = vmatpush.msra.mxu0 %v101
    %148 = vmatpush.msra.mxu0 %v100
    %149 = vmatmul.f32.gmra.mxu0 %v110
    %v150 = vpop.f32.mrf.mxu0
    %v151 = vadd.f32 %v106, %v150
    %152 = vmatmul.f32.gmra.mxu0 %v113
    %v153 = vpop.f32.mrf.mxu0
    %v154 = vadd.f32 %v106, %v153
    %155 = vmatmul.f32.gmra.mxu0 %v116
    %v156 = vpop.f32.mrf.mxu0
    %v157 = vadd.f32 %v106, %v156
    %158 = vmatmul.f32.gmra.mxu0 %v119
    %v159 = vpop.f32.mrf.mxu0
    %v160 = vadd.f32 %v106, %v159
    %161 = vmatmul.f32.gmra.mxu0 %v122
    %v162 = vpop.f32.mrf.mxu0
    %v163 = vadd.f32 %v106, %v162
    %164 = vmatmul.f32.gmra.mxu0 %v125
    %v165 = vpop.f32.mrf.mxu0
    %v166 = vadd.f32 %v106, %v165
    %167 = vmatmul.f32.gmra.mxu0 %v128
    %v168 = vpop.f32.mrf.mxu0
    %v169 = vadd.f32 %v106, %v168
    %170 = vmatmul.f32.gmra.mxu0 %v131
    %v171 = vpop.f32.mrf.mxu0
    %v172 = vadd.f32 %v106, %v171
    %173 = vdwg.mxu0
    %174 = vst [vmem:[#allocation2] sm:$0xff] %v151
    %175 = vst [vmem:[#allocation2 + $0x8] sm:$0xff] %v154
    %176 = vst [vmem:[#allocation2 + $0x10] sm:$0xff] %v157
    %177 = vst [vmem:[#allocation2 + $0x18] sm:$0xff] %v160
    %178 = vst [vmem:[#allocation2 + $0x20] sm:$0xff] %v163
    %179 = vst [vmem:[#allocation2 + $0x28] sm:$0xff] %v166
    %180 = vst [vmem:[#allocation2 + $0x30] sm:$0xff] %v169
    %181 = vst [vmem:[#allocation2 + $0x38] sm:$0xff] %v172
    // Predicated region
    $region18: #{tpu_custom_call.1} parent=1 // pred_check
      _
    $region19: #{tpu_custom_call.1} parent=1 // pred_check_branch
      %183 = sbr.rel (0) target = $region21
    $region20: #{tpu_custom_call.1} parent=1 // pred_region
      %185 = vsyncadd [#allocation3], 0
      %s186 = sshll.u32 [#allocation2], 4
      %s187 = int_to_ptr.vmem [resolvable:$true] %s186
      %s188 = sshll.u32 %s4, 4
      %s189 = int_to_ptr.hbm [resolvable:$true] %s188
      %194 = dma.vmem_to_hbm [thread:$0]  %s187, 1024, %s189, [#allocation3], 128, 128, 8
    $region21: #{tpu_custom_call.1} parent=1 // pred_fallthru
      _
    // Predicated region
    $region22: #{tpu_custom_call.1} parent=1 // pred_check
      _
    $region23: #{tpu_custom_call.1} parent=1 // pred_check_branch
      %196 = sbr.rel (0) target = $region25
    $region24: #{tpu_custom_call.1} parent=1 // pred_region
      %198 = dma.done [#allocation3], 1024
    $region25: #{tpu_custom_call.1} parent=1 // pred_fallthru
      _
    %199 = vsyncpa [#allocation3], 1

</llo_original>
